<compile_context>
chip_gen: v6e
topology: v6e:2x2x1
jax: 0.10.0
libtpu: 0.0.40
codegen_flags: <defaults>
</compile_context>

<pallas_src>
import functools

import jax
import jax.numpy as jnp
from jax import lax
from jax.experimental import pallas as pl
from jax.experimental.pallas import tpu as pltpu


# ---------------------------------------------------------------------------
# Counter-based PRNG (threefry-2x32, 20 rounds). Uses only +, ^, shifts so it
# lowers cleanly both on the TPU VPU and under CPU interpret mode.
# ---------------------------------------------------------------------------
def _rotl32(x, r):
    return (x << jnp.uint32(r)) | (x >> jnp.uint32(32 - r))


def _threefry2x32(c0, c1, k0, k1):
    ks0, ks1 = k0, k1
    ks2 = k0 ^ k1 ^ jnp.uint32(0x1BD11BDA)
    x0 = c0 + ks0
    x1 = c1 + ks1
    rots = ((13, 15, 26, 6), (17, 29, 16, 24))
    inject = ((ks1, ks2, 1), (ks2, ks0, 2), (ks0, ks1, 3),
              (ks1, ks2, 4), (ks2, ks0, 5))
    for g, (a, b, inc) in enumerate(inject):
        for r in rots[g % 2]:
            x0 = x0 + x1
            x1 = _rotl32(x1, r)
            x1 = x1 ^ x0
        x0 = x0 + a
        x1 = x1 + b + jnp.uint32(inc)
    return x0


# ---------------------------------------------------------------------------
# Dropout kernel (one (block_rows, cols) tile per grid step).
# ---------------------------------------------------------------------------
def _dropout_kernel(seed_ref, x_ref, o_ref, *, p, scale, block_rows):
    i = pl.program_id(0)
    bm, bn = x_ref.shape

    # Global element coordinates -> tiling-invariant, per-tile-distinct randoms.
    row = lax.broadcasted_iota(jnp.int32, (bm, bn), 0) + i * block_rows
    col = lax.broadcasted_iota(jnp.int32, (bm, bn), 1)

    k0 = seed_ref[0].astype(jnp.uint32)
    k1 = jnp.uint32(0x7F4A7C15)
    bits = _threefry2x32(row.astype(jnp.uint32), col.astype(jnp.uint32), k0, k1)

    # Top 24 bits -> uniform [0, 1); drop with probability p.
    u = (bits >> jnp.uint32(8)).astype(jnp.int32).astype(jnp.float32)
    u = u * jnp.float32(1.0 / (1 << 24))
    keep = u >= jnp.float32(p)

    # Fold the 1/(1-p) scale into the select: one vsel + one vmul, no upcast.
    gate = jnp.where(keep, jnp.float32(scale), jnp.float32(0.0)).astype(x_ref.dtype)
    o_ref[...] = x_ref[...] * gate


def _pick_block_rows(rows, cols, itemsize):
    """Largest row-block that divides `rows`, is a multiple of the sublane
    packing for this dtype, and stays within ~512 rows / ~2 MiB so the
    double-buffered in+out tiles fit the scoped-VMEM default on v5e/v6e/v7x."""
    sublane = max(8, 32 // max(1, itemsize))   # 8 (f32), 16 (bf16), 32 (int8)
    if rows % sublane != 0:
        return rows                            # odd batch: single full block
    bytes_cap_rows = max(sublane, (2 * 1024 * 1024) // max(1, cols * itemsize))
    target = min(rows, 512, bytes_cap_rows)
    best = sublane
    br = sublane
    while br <= target:
        if rows % br == 0:
            best = br
        br += sublane
    return best


# ---------------------------------------------------------------------------
# Python wrapper == MentionEncoder.forward(input, word_lut)
# ---------------------------------------------------------------------------
def mention_encoder(x, word_lut=None, *, dropout_p=0.5, training=True, seed=0):
    del word_lut  # unused by the reference forward pass

    # self.dropout is None / eval mode  ->  pure identity. No kernel: a
    # pass-through pallas_call would just burn 2x array-size of HBM bandwidth.
    if (dropout_p is None) or (dropout_p == 0.0) or (not training):
        return x

    orig_shape = x.shape
    x2 = x if x.ndim == 2 else x.reshape(-1, x.shape[-1])
    rows, cols = x2.shape
    block_rows = _pick_block_rows(rows, cols, x2.dtype.itemsize)
    grid = (rows // block_rows,)

    kernel = functools.partial(
        _dropout_kernel,
        p=float(dropout_p),
        scale=1.0 / (1.0 - float(dropout_p)),
        block_rows=block_rows,
    )
    seed_arr = jnp.asarray([seed], dtype=jnp.int32)

    out = pl.pallas_call(
        kernel,
        out_shape=jax.ShapeDtypeStruct(x2.shape, x2.dtype),
        grid_spec=pltpu.PrefetchScalarGridSpec(
            num_scalar_prefetch=1,          # seed -> SMEM, passed to index_maps
            grid=grid,
            in_specs=[pl.BlockSpec((block_rows, cols), lambda i, seed: (i, 0))],
            out_specs=pl.BlockSpec((block_rows, cols), lambda i, seed: (i, 0)),
        ),
        compiler_params=pltpu.CompilerParams(
            dimension_semantics=("parallel",),
        ),
    )(seed_arr, x2)

    return out if x.ndim == 2 else out.reshape(orig_shape)


if __name__ == "__main__":
    key = jax.random.PRNGKey(0)

    # Small shapes consistent with the module: mention embedding (batch, dim).
    batch, embed_dim = 8, 128
    k1, k2 = jax.random.split(key)
    x = jax.random.normal(k1, (batch, embed_dim), dtype=jnp.float32)
    word_lut = jnp.zeros((16, embed_dim), dtype=jnp.float32)  # unused by forward()

    # Train mode with dropout (args.dropout = 0.5).
    y_train = jax.block_until_ready(
        mention_encoder(x, word_lut, dropout_p=0.5, training=True, seed=42))
    # No-dropout / eval path -> identity.
    y_eval = jax.block_until_ready(
        mention_encoder(x, word_lut, dropout_p=0.0, training=False))

    assert y_eval.shape == x.shape and bool(jnp.allclose(y_eval, x))
    zero_mask = y_train == 0.0
    scaled_ok = jnp.where(zero_mask, True, jnp.isclose(y_train, 2.0 * x, atol=1e-5))
    assert bool(jnp.all(scaled_ok))

    # Larger case exercising the tiled grid path (2 tiles of 512 rows).
    xb = jax.random.normal(k2, (1024, 256), dtype=jnp.float32)
    yb = jax.block_until_ready(
        mention_encoder(xb, None, dropout_p=0.5, training=True, seed=7))
    zb = yb == 0.0
    ok = jnp.where(zb, True, jnp.isclose(yb, 2.0 * xb, atol=1e-5))
    assert bool(jnp.all(ok))
    frac = float(jnp.mean(zb.astype(jnp.float32)))
    assert 0.40 < frac < 0.60, f"drop fraction {frac} far from p=0.5"
    # Tiles must not reuse the same mask.
    assert not bool(jnp.all(zb[:512] == zb[512:]))

    print("KERNEL_OK")
</pallas_src>

<mosaic_0001>
module attributes {stable_mosaic.version = 11 : i64} {
  func.func @_dropout_kernel(%arg0: i32, %arg1: memref<1xi32, #tpu.memory_space<smem>>, %arg2: memref<8x128xf32, #tpu.memory_space<vmem>>, %arg3: memref<8x128xf32, #tpu.memory_space<vmem>>) attributes {dimension_semantics = [#tpu.dimension_semantics<parallel>], iteration_bounds = array<i64: 1>, scalar_prefetch = 1 : i64, scratch_operands = 0 : i64, tpu.core_type = #tpu.core_type<tc>, window_params = [{transform_indices = @transform_0, window_bounds = array<i64: 8, 128>}, {transform_indices = @transform_1, window_bounds = array<i64: 8, 128>}]} {
    %0 = tpu.iota {dimensions = array<i32: 0>} : vector<8x128xi32>
    %c8_i32 = arith.constant 8 : i32
    %1 = arith.muli %arg0, %c8_i32 : i32
    %2 = vector.broadcast %1 : i32 to vector<8x128xi32>
    %3 = arith.addi %0, %2 : vector<8x128xi32>
    %4 = tpu.iota {dimensions = array<i32: 1>} : vector<8x128xi32>
    %c0 = arith.constant 0 : index
    %5 = memref.load %arg1[%c0] : memref<1xi32, #tpu.memory_space<smem>>
    %c2135587861_i32 = arith.constant 2135587861 : i32
    %6 = arith.xori %5, %c2135587861_i32 : i32
    %c466688986_i32 = arith.constant 466688986 : i32
    %7 = arith.xori %6, %c466688986_i32 : i32
    %8 = vector.broadcast %5 : i32 to vector<8x128xi32>
    %9 = arith.addi %3, %8 : vector<8x128xi32>
    %c2135587861_i32_0 = arith.constant 2135587861 : i32
    %10 = vector.broadcast %c2135587861_i32_0 : i32 to vector<8x128xi32>
    %11 = arith.addi %4, %10 : vector<8x128xi32>
    %12 = arith.addi %9, %11 : vector<8x128xi32>
    %c13_i32 = arith.constant 13 : i32
    %13 = vector.broadcast %c13_i32 : i32 to vector<8x128xi32>
    %14 = arith.shli %11, %13 : vector<8x128xi32>
    %c19_i32 = arith.constant 19 : i32
    %15 = vector.broadcast %c19_i32 : i32 to vector<8x128xi32>
    %16 = arith.shrui %11, %15 : vector<8x128xi32>
    %17 = arith.ori %14, %16 : vector<8x128xi32>
    %18 = arith.xori %17, %12 : vector<8x128xi32>
    %19 = arith.addi %12, %18 : vector<8x128xi32>
    %c15_i32 = arith.constant 15 : i32
    %20 = vector.broadcast %c15_i32 : i32 to vector<8x128xi32>
    %21 = arith.shli %18, %20 : vector<8x128xi32>
    %c17_i32 = arith.constant 17 : i32
    %22 = vector.broadcast %c17_i32 : i32 to vector<8x128xi32>
    %23 = arith.shrui %18, %22 : vector<8x128xi32>
    %24 = arith.ori %21, %23 : vector<8x128xi32>
    %25 = arith.xori %24, %19 : vector<8x128xi32>
    %26 = arith.addi %19, %25 : vector<8x128xi32>
    %c26_i32 = arith.constant 26 : i32
    %27 = vector.broadcast %c26_i32 : i32 to vector<8x128xi32>
    %28 = arith.shli %25, %27 : vector<8x128xi32>
    %c6_i32 = arith.constant 6 : i32
    %29 = vector.broadcast %c6_i32 : i32 to vector<8x128xi32>
    %30 = arith.shrui %25, %29 : vector<8x128xi32>
    %31 = arith.ori %28, %30 : vector<8x128xi32>
    %32 = arith.xori %31, %26 : vector<8x128xi32>
    %33 = arith.addi %26, %32 : vector<8x128xi32>
    %c6_i32_1 = arith.constant 6 : i32
    %34 = vector.broadcast %c6_i32_1 : i32 to vector<8x128xi32>
    %35 = arith.shli %32, %34 : vector<8x128xi32>
    %c26_i32_2 = arith.constant 26 : i32
    %36 = vector.broadcast %c26_i32_2 : i32 to vector<8x128xi32>
    %37 = arith.shrui %32, %36 : vector<8x128xi32>
    %38 = arith.ori %35, %37 : vector<8x128xi32>
    %39 = arith.xori %38, %33 : vector<8x128xi32>
    %c2135587861_i32_3 = arith.constant 2135587861 : i32
    %40 = vector.broadcast %c2135587861_i32_3 : i32 to vector<8x128xi32>
    %41 = arith.addi %33, %40 : vector<8x128xi32>
    %42 = vector.broadcast %7 : i32 to vector<8x128xi32>
    %43 = arith.addi %39, %42 : vector<8x128xi32>
    %c1_i32 = arith.constant 1 : i32
    %44 = vector.broadcast %c1_i32 : i32 to vector<8x128xi32>
    %45 = arith.addi %43, %44 : vector<8x128xi32>
    %46 = arith.addi %41, %45 : vector<8x128xi32>
    %c17_i32_4 = arith.constant 17 : i32
    %47 = vector.broadcast %c17_i32_4 : i32 to vector<8x128xi32>
    %48 = arith.shli %45, %47 : vector<8x128xi32>
    %c15_i32_5 = arith.constant 15 : i32
    %49 = vector.broadcast %c15_i32_5 : i32 to vector<8x128xi32>
    %50 = arith.shrui %45, %49 : vector<8x128xi32>
    %51 = arith.ori %48, %50 : vector<8x128xi32>
    %52 = arith.xori %51, %46 : vector<8x128xi32>
    %53 = arith.addi %46, %52 : vector<8x128xi32>
    %c29_i32 = arith.constant 29 : i32
    %54 = vector.broadcast %c29_i32 : i32 to vector<8x128xi32>
    %55 = arith.shli %52, %54 : vector<8x128xi32>
    %c3_i32 = arith.constant 3 : i32
    %56 = vector.broadcast %c3_i32 : i32 to vector<8x128xi32>
    %57 = arith.shrui %52, %56 : vector<8x128xi32>
    %58 = arith.ori %55, %57 : vector<8x128xi32>
    %59 = arith.xori %58, %53 : vector<8x128xi32>
    %60 = arith.addi %53, %59 : vector<8x128xi32>
    %c16_i32 = arith.constant 16 : i32
    %61 = vector.broadcast %c16_i32 : i32 to vector<8x128xi32>
    %62 = arith.shli %59, %61 : vector<8x128xi32>
    %c16_i32_6 = arith.constant 16 : i32
    %63 = vector.broadcast %c16_i32_6 : i32 to vector<8x128xi32>
    %64 = arith.shrui %59, %63 : vector<8x128xi32>
    %65 = arith.ori %62, %64 : vector<8x128xi32>
    %66 = arith.xori %65, %60 : vector<8x128xi32>
    %67 = arith.addi %60, %66 : vector<8x128xi32>
    %c24_i32 = arith.constant 24 : i32
    %68 = vector.broadcast %c24_i32 : i32 to vector<8x128xi32>
    %69 = arith.shli %66, %68 : vector<8x128xi32>
    %c8_i32_7 = arith.constant 8 : i32
    %70 = vector.broadcast %c8_i32_7 : i32 to vector<8x128xi32>
    %71 = arith.shrui %66, %70 : vector<8x128xi32>
    %72 = arith.ori %69, %71 : vector<8x128xi32>
    %73 = arith.xori %72, %67 : vector<8x128xi32>
    %74 = vector.broadcast %7 : i32 to vector<8x128xi32>
    %75 = arith.addi %67, %74 : vector<8x128xi32>
    %76 = vector.broadcast %5 : i32 to vector<8x128xi32>
    %77 = arith.addi %73, %76 : vector<8x128xi32>
    %c2_i32 = arith.constant 2 : i32
    %78 = vector.broadcast %c2_i32 : i32 to vector<8x128xi32>
    %79 = arith.addi %77, %78 : vector<8x128xi32>
    %80 = arith.addi %75, %79 : vector<8x128xi32>
    %c13_i32_8 = arith.constant 13 : i32
    %81 = vector.broadcast %c13_i32_8 : i32 to vector<8x128xi32>
    %82 = arith.shli %79, %81 : vector<8x128xi32>
    %c19_i32_9 = arith.constant 19 : i32
    %83 = vector.broadcast %c19_i32_9 : i32 to vector<8x128xi32>
    %84 = arith.shrui %79, %83 : vector<8x128xi32>
    %85 = arith.ori %82, %84 : vector<8x128xi32>
    %86 = arith.xori %85, %80 : vector<8x128xi32>
    %87 = arith.addi %80, %86 : vector<8x128xi32>
    %c15_i32_10 = arith.constant 15 : i32
    %88 = vector.broadcast %c15_i32_10 : i32 to vector<8x128xi32>
    %89 = arith.shli %86, %88 : vector<8x128xi32>
    %c17_i32_11 = arith.constant 17 : i32
    %90 = vector.broadcast %c17_i32_11 : i32 to vector<8x128xi32>
    %91 = arith.shrui %86, %90 : vector<8x128xi32>
    %92 = arith.ori %89, %91 : vector<8x128xi32>
    %93 = arith.xori %92, %87 : vector<8x128xi32>
    %94 = arith.addi %87, %93 : vector<8x128xi32>
    %c26_i32_12 = arith.constant 26 : i32
    %95 = vector.broadcast %c26_i32_12 : i32 to vector<8x128xi32>
    %96 = arith.shli %93, %95 : vector<8x128xi32>
    %c6_i32_13 = arith.constant 6 : i32
    %97 = vector.broadcast %c6_i32_13 : i32 to vector<8x128xi32>
    %98 = arith.shrui %93, %97 : vector<8x128xi32>
    %99 = arith.ori %96, %98 : vector<8x128xi32>
    %100 = arith.xori %99, %94 : vector<8x128xi32>
    %101 = arith.addi %94, %100 : vector<8x128xi32>
    %c6_i32_14 = arith.constant 6 : i32
    %102 = vector.broadcast %c6_i32_14 : i32 to vector<8x128xi32>
    %103 = arith.shli %100, %102 : vector<8x128xi32>
    %c26_i32_15 = arith.constant 26 : i32
    %104 = vector.broadcast %c26_i32_15 : i32 to vector<8x128xi32>
    %105 = arith.shrui %100, %104 : vector<8x128xi32>
    %106 = arith.ori %103, %105 : vector<8x128xi32>
    %107 = arith.xori %106, %101 : vector<8x128xi32>
    %108 = vector.broadcast %5 : i32 to vector<8x128xi32>
    %109 = arith.addi %101, %108 : vector<8x128xi32>
    %c2135587861_i32_16 = arith.constant 2135587861 : i32
    %110 = vector.broadcast %c2135587861_i32_16 : i32 to vector<8x128xi32>
    %111 = arith.addi %107, %110 : vector<8x128xi32>
    %c3_i32_17 = arith.constant 3 : i32
    %112 = vector.broadcast %c3_i32_17 : i32 to vector<8x128xi32>
    %113 = arith.addi %111, %112 : vector<8x128xi32>
    %114 = arith.addi %109, %113 : vector<8x128xi32>
    %c17_i32_18 = arith.constant 17 : i32
    %115 = vector.broadcast %c17_i32_18 : i32 to vector<8x128xi32>
    %116 = arith.shli %113, %115 : vector<8x128xi32>
    %c15_i32_19 = arith.constant 15 : i32
    %117 = vector.broadcast %c15_i32_19 : i32 to vector<8x128xi32>
    %118 = arith.shrui %113, %117 : vector<8x128xi32>
    %119 = arith.ori %116, %118 : vector<8x128xi32>
    %120 = arith.xori %119, %114 : vector<8x128xi32>
    %121 = arith.addi %114, %120 : vector<8x128xi32>
    %c29_i32_20 = arith.constant 29 : i32
    %122 = vector.broadcast %c29_i32_20 : i32 to vector<8x128xi32>
    %123 = arith.shli %120, %122 : vector<8x128xi32>
    %c3_i32_21 = arith.constant 3 : i32
    %124 = vector.broadcast %c3_i32_21 : i32 to vector<8x128xi32>
    %125 = arith.shrui %120, %124 : vector<8x128xi32>
    %126 = arith.ori %123, %125 : vector<8x128xi32>
    %127 = arith.xori %126, %121 : vector<8x128xi32>
    %128 = arith.addi %121, %127 : vector<8x128xi32>
    %c16_i32_22 = arith.constant 16 : i32
    %129 = vector.broadcast %c16_i32_22 : i32 to vector<8x128xi32>
    %130 = arith.shli %127, %129 : vector<8x128xi32>
    %c16_i32_23 = arith.constant 16 : i32
    %131 = vector.broadcast %c16_i32_23 : i32 to vector<8x128xi32>
    %132 = arith.shrui %127, %131 : vector<8x128xi32>
    %133 = arith.ori %130, %132 : vector<8x128xi32>
    %134 = arith.xori %133, %128 : vector<8x128xi32>
    %135 = arith.addi %128, %134 : vector<8x128xi32>
    %c24_i32_24 = arith.constant 24 : i32
    %136 = vector.broadcast %c24_i32_24 : i32 to vector<8x128xi32>
    %137 = arith.shli %134, %136 : vector<8x128xi32>
    %c8_i32_25 = arith.constant 8 : i32
    %138 = vector.broadcast %c8_i32_25 : i32 to vector<8x128xi32>
    %139 = arith.shrui %134, %138 : vector<8x128xi32>
    %140 = arith.ori %137, %139 : vector<8x128xi32>
    %141 = arith.xori %140, %135 : vector<8x128xi32>
    %c2135587861_i32_26 = arith.constant 2135587861 : i32
    %142 = vector.broadcast %c2135587861_i32_26 : i32 to vector<8x128xi32>
    %143 = arith.addi %135, %142 : vector<8x128xi32>
    %144 = vector.broadcast %7 : i32 to vector<8x128xi32>
    %145 = arith.addi %141, %144 : vector<8x128xi32>
    %c4_i32 = arith.constant 4 : i32
    %146 = vector.broadcast %c4_i32 : i32 to vector<8x128xi32>
    %147 = arith.addi %145, %146 : vector<8x128xi32>
    %148 = arith.addi %143, %147 : vector<8x128xi32>
    %c13_i32_27 = arith.constant 13 : i32
    %149 = vector.broadcast %c13_i32_27 : i32 to vector<8x128xi32>
    %150 = arith.shli %147, %149 : vector<8x128xi32>
    %c19_i32_28 = arith.constant 19 : i32
    %151 = vector.broadcast %c19_i32_28 : i32 to vector<8x128xi32>
    %152 = arith.shrui %147, %151 : vector<8x128xi32>
    %153 = arith.ori %150, %152 : vector<8x128xi32>
    %154 = arith.xori %153, %148 : vector<8x128xi32>
    %155 = arith.addi %148, %154 : vector<8x128xi32>
    %c15_i32_29 = arith.constant 15 : i32
    %156 = vector.broadcast %c15_i32_29 : i32 to vector<8x128xi32>
    %157 = arith.shli %154, %156 : vector<8x128xi32>
    %c17_i32_30 = arith.constant 17 : i32
    %158 = vector.broadcast %c17_i32_30 : i32 to vector<8x128xi32>
    %159 = arith.shrui %154, %158 : vector<8x128xi32>
    %160 = arith.ori %157, %159 : vector<8x128xi32>
    %161 = arith.xori %160, %155 : vector<8x128xi32>
    %162 = arith.addi %155, %161 : vector<8x128xi32>
    %c26_i32_31 = arith.constant 26 : i32
    %163 = vector.broadcast %c26_i32_31 : i32 to vector<8x128xi32>
    %164 = arith.shli %161, %163 : vector<8x128xi32>
    %c6_i32_32 = arith.constant 6 : i32
    %165 = vector.broadcast %c6_i32_32 : i32 to vector<8x128xi32>
    %166 = arith.shrui %161, %165 : vector<8x128xi32>
    %167 = arith.ori %164, %166 : vector<8x128xi32>
    %168 = arith.xori %167, %162 : vector<8x128xi32>
    %169 = arith.addi %162, %168 : vector<8x128xi32>
    %170 = vector.broadcast %7 : i32 to vector<8x128xi32>
    %171 = arith.addi %169, %170 : vector<8x128xi32>
    %c8_i32_33 = arith.constant 8 : i32
    %172 = vector.broadcast %c8_i32_33 : i32 to vector<8x128xi32>
    %173 = arith.shrui %171, %172 : vector<8x128xi32>
    %174 = arith.sitofp %173 : vector<8x128xi32> to vector<8x128xf32>
    %cst = arith.constant 5.96046448E-8 : f32
    %175 = vector.broadcast %cst : f32 to vector<8x128xf32>
    %176 = arith.mulf %174, %175 : vector<8x128xf32>
    %cst_34 = arith.constant 5.000000e-01 : f32
    %177 = vector.broadcast %cst_34 : f32 to vector<8x128xf32>
    %178 = arith.cmpf oge, %176, %177 : vector<8x128xf32>
    %cst_35 = arith.constant 2.000000e+00 : f32
    %cst_36 = arith.constant 0.000000e+00 : f32
    %179 = vector.broadcast %cst_35 : f32 to vector<8x128xf32>
    %180 = vector.broadcast %cst_36 : f32 to vector<8x128xf32>
    %181 = arith.select %178, %179, %180 : vector<8x128xi1>, vector<8x128xf32>
    %c0_37 = arith.constant 0 : index
    %c0_38 = arith.constant 0 : index
    %182 = vector.load %arg2[%c0_37, %c0_38] : memref<8x128xf32, #tpu.memory_space<vmem>>, vector<8x128xf32>
    %183 = arith.mulf %182, %181 : vector<8x128xf32>
    %c0_39 = arith.constant 0 : index
    %c0_40 = arith.constant 0 : index
    %184 = vector.load %arg3[%c0_39, %c0_40] : memref<8x128xf32, #tpu.memory_space<vmem>>, vector<8x128xf32>
    tpu.vector_store %arg3[%c0_39, %c0_40], %183 {strides = array<i32>} : memref<8x128xf32, #tpu.memory_space<vmem>>, vector<8x128xf32>,
    return
  }
  func.func @transform_0(%arg0: i32, %arg1: memref<1xi32, #tpu.memory_space<smem>>) -> (i32, i32) {
    %c0_i32 = arith.constant 0 : i32
    %c0_i32_0 = arith.constant 0 : i32
    return %arg0, %c0_i32 : i32, i32
  }
  func.func @transform_1(%arg0: i32, %arg1: memref<1xi32, #tpu.memory_space<smem>>) -> (i32, i32) {
    %c0_i32 = arith.constant 0 : i32
    %c0_i32_0 = arith.constant 0 : i32
    return %arg0, %c0_i32 : i32, i32
  }
}

</mosaic_0001>

<llo_original>
// kernel: tpu_custom_call.1
$region0: #{tpu_custom_call.1}
  #allocation0 [shape = 'u32[]', space=smem, size = 0x4, offset = 0x4, fixed_abs, tag = 'smem constant byte address 0x4 - core index']
  #allocation1 [shape = 'u32[144,128]{1,0:T(1,128)}', space=vmem, size = 0x12000, scoped, tag = 'internal scratch']
  #allocation2 [shape = 's32[1]{0}', space=sflag, size = 0x4, scoped, tag = 'scoped memory for tpu_custom_call.1']
  #allocation3 [shape = 's32[1]{0:T(128)S(6)}', space=smem, size = 0x200, scoped, tag = 'prefetched SMEM operand 0']
  %s0 = inlined_call_operand.<no memory space> [shape: s32[1], index: 0, kind: input, shape index: {}]
  %s1 = inlined_call_operand.hbm [shape: f32[8,128], index: 1, kind: input, shape index: {}]
  %s2 = inlined_call_operand.hbm [shape: f32[8,128], index: 2, kind: output, shape index: {}]
  %s3 = sld [smem:[#allocation0]]
  $region18: #{tpu_custom_call.1} parent=0
    _
  %s5 = ssub.s32 1, %s3
  %s6 = scalar_select 0, %s5, %s3
  %7 = sst [smem:[#allocation3]] %s0
  $region1: #{tpu_custom_call.1} parent=0
    #allocation4 [shape = 'u8[4096]{0}', space=vmem, size = 0x1000, scoped, tag = 'input window, operand 1, single buffered']
    #allocation5 [shape = 's32[1]{0}', space=sflag, size = 0x4, scoped, tag = 'scoped memory for tpu_custom_call.1']
    #allocation6 [shape = 's32[1]{0}', space=sflag, size = 0x4, scoped, tag = 'scoped memory for tpu_custom_call.1']
    #allocation7 [shape = 'u8[4096]{0}', space=vmem, size = 0x1000, scoped, tag = 'output window, operand 0, single buffered']
    %8 = vsyncpa [#allocation5], 0
    %9 = vsyncpa [#allocation6], 0
    // Predicated region
    $region2: #{tpu_custom_call.1} parent=1 // pred_check
      _
    $region3: #{tpu_custom_call.1} parent=1 // pred_check_branch
      %11 = sbr.rel (0) target = $region5
    $region4: #{tpu_custom_call.1} parent=1 // pred_region
      %s13 = ssub.s32 128, 128
      %14 = vsyncadd [#allocation5], %s13
      %s16 = sshll.u32 [#allocation4], 4
      %s17 = int_to_ptr.vmem [resolvable:$true] %s16
      %19 = dma.hbm_to_vmem [thread:$0]  %s1, 128, %s17, [#allocation5]
    $region5: #{tpu_custom_call.1} parent=1 // pred_fallthru
      _
    // Predicated region
    $region6: #{tpu_custom_call.1} parent=1 // pred_check
      _
    $region7: #{tpu_custom_call.1} parent=1 // pred_check_branch
      %21 = sbr.rel (0) target = $region9
    $region8: #{tpu_custom_call.1} parent=1 // pred_region
      %22 = dma.done [#allocation5], 128
    $region9: #{tpu_custom_call.1} parent=1 // pred_fallthru
      _
    %v23 = vlaneseq
    %v24 = vshrl.u32 %v23, 7
    %s25 = smul.u32 0, 8
    %v26 = vstv %s25
    %v27 = vadd.s32 %v24, %v26
    %v28 = vlaneseq
    %v29 = vand.u32 %v28, 127
    %s30 = sld [smem:[#allocation3]]
    %s31 = sxor.u32 %s30, 2135587861
    %s32 = sxor.u32 %s31, 466688986
    %v33 = vstv %s30
    %v34 = vadd.s32 %v27, %v33
    %v35 = vadd.s32 %v29, 2135587861
    %v36 = vadd.s32 %v34, %v35
    %v37 = vshll.u32 %v35, 13
    %v38 = vshrl.u32 %v35, 19
    %v39 = vor.u32 %v37, %v38
    %v40 = vxor.u32 %v39, %v36
    %v41 = vadd.s32 %v36, %v40
    %v42 = vshll.u32 %v40, 15
    %v43 = vshrl.u32 %v40, 17
    %v44 = vor.u32 %v42, %v43
    %v45 = vxor.u32 %v44, %v41
    %v46 = vadd.s32 %v41, %v45
    %v47 = vshll.u32 %v45, 26
    %v48 = vshrl.u32 %v45, 6
    %v49 = vor.u32 %v47, %v48
    %v50 = vxor.u32 %v49, %v46
    %v51 = vadd.s32 %v46, %v50
    %v52 = vshll.u32 %v50, 6
    %v53 = vshrl.u32 %v50, 26
    %v54 = vor.u32 %v52, %v53
    %v55 = vxor.u32 %v54, %v51
    %v56 = vadd.s32 %v51, 2135587861
    %v57 = vstv %s32
    %v58 = vadd.s32 %v55, %v57
    %v59 = vadd.s32 %v58, 1
    %v60 = vadd.s32 %v56, %v59
    %v61 = vshll.u32 %v59, 17
    %v62 = vshrl.u32 %v59, 15
    %v63 = vor.u32 %v61, %v62
    %v64 = vxor.u32 %v63, %v60
    %v65 = vadd.s32 %v60, %v64
    %v66 = vshll.u32 %v64, 29
    %v67 = vshrl.u32 %v64, 3
    %v68 = vor.u32 %v66, %v67
    %v69 = vxor.u32 %v68, %v65
    %v70 = vadd.s32 %v65, %v69
    %v71 = vshll.u32 %v69, 16
    %v72 = vshrl.u32 %v69, 16
    %v73 = vor.u32 %v71, %v72
    %v74 = vxor.u32 %v73, %v70
    %v75 = vadd.s32 %v70, %v74
    %v76 = vshll.u32 %v74, 24
    %v77 = vshrl.u32 %v74, 8
    %v78 = vor.u32 %v76, %v77
    %v79 = vxor.u32 %v78, %v75
    %v80 = vadd.s32 %v75, %v57
    %v81 = vadd.s32 %v79, %v33
    %v82 = vadd.s32 %v81, 2
    %v83 = vadd.s32 %v80, %v82
    %v84 = vshll.u32 %v82, 13
    %v85 = vshrl.u32 %v82, 19
    %v86 = vor.u32 %v84, %v85
    %v87 = vxor.u32 %v86, %v83
    %v88 = vadd.s32 %v83, %v87
    %v89 = vshll.u32 %v87, 15
    %v90 = vshrl.u32 %v87, 17
    %v91 = vor.u32 %v89, %v90
    %v92 = vxor.u32 %v91, %v88
    %v93 = vadd.s32 %v88, %v92
    %v94 = vshll.u32 %v92, 26
    %v95 = vshrl.u32 %v92, 6
    %v96 = vor.u32 %v94, %v95
    %v97 = vxor.u32 %v96, %v93
    %v98 = vadd.s32 %v93, %v97
    %v99 = vshll.u32 %v97, 6
    %v100 = vshrl.u32 %v97, 26
    %v101 = vor.u32 %v99, %v100
    %v102 = vxor.u32 %v101, %v98
    %v103 = vadd.s32 %v98, %v33
    %v104 = vadd.s32 %v102, 2135587861
    %v105 = vadd.s32 %v104, 3
    %v106 = vadd.s32 %v103, %v105
    %v107 = vshll.u32 %v105, 17
    %v108 = vshrl.u32 %v105, 15
    %v109 = vor.u32 %v107, %v108
    %v110 = vxor.u32 %v109, %v106
    %v111 = vadd.s32 %v106, %v110
    %v112 = vshll.u32 %v110, 29
    %v113 = vshrl.u32 %v110, 3
    %v114 = vor.u32 %v112, %v113
    %v115 = vxor.u32 %v114, %v111
    %v116 = vadd.s32 %v111, %v115
    %v117 = vshll.u32 %v115, 16
    %v118 = vshrl.u32 %v115, 16
    %v119 = vor.u32 %v117, %v118
    %v120 = vxor.u32 %v119, %v116
    %v121 = vadd.s32 %v116, %v120
    %v122 = vshll.u32 %v120, 24
    %v123 = vshrl.u32 %v120, 8
    %v124 = vor.u32 %v122, %v123
    %v125 = vxor.u32 %v124, %v121
    %v126 = vadd.s32 %v121, 2135587861
    %v127 = vadd.s32 %v125, %v57
    %v128 = vadd.s32 %v127, 4
    %v129 = vadd.s32 %v126, %v128
    %v130 = vshll.u32 %v128, 13
    %v131 = vshrl.u32 %v128, 19
    %v132 = vor.u32 %v130, %v131
    %v133 = vxor.u32 %v132, %v129
    %v134 = vadd.s32 %v129, %v133
    %v135 = vshll.u32 %v133, 15
    %v136 = vshrl.u32 %v133, 17
    %v137 = vor.u32 %v135, %v136
    %v138 = vxor.u32 %v137, %v134
    %v139 = vadd.s32 %v134, %v138
    %v140 = vshll.u32 %v138, 26
    %v141 = vshrl.u32 %v138, 6
    %v142 = vor.u32 %v140, %v141
    %v143 = vxor.u32 %v142, %v139
    %v144 = vadd.s32 %v139, %v143
    %v145 = vadd.s32 %v144, %v57
    %v146 = vshrl.u32 %v145, 8
    %v147 = vcvt.s32.f32 %v146
    %v148 = vmul.f32 %v147, 5.9604645e-08
    %vm149 = vcmp.ge.f32.partialorder %v148, 0.5
    %v150 = vsel %vm149, 2.0, 0.0
    %v151 = vld [vmem:[#allocation4] sm:$0xff]
    %v152 = vmul.f32 %v151, %v150
    %153 = vst [vmem:[#allocation7] sm:$0xff] %v152
    // Predicated region
    $region10: #{tpu_custom_call.1} parent=1 // pred_check
      _
    $region11: #{tpu_custom_call.1} parent=1 // pred_check_branch
      %155 = sbr.rel (0) target = $region13
    $region12: #{tpu_custom_call.1} parent=1 // pred_region
      %s157 = ssub.s32 128, 128
      %158 = vsyncadd [#allocation6], %s157
      %s160 = sshll.u32 [#allocation7], 4
      %s161 = int_to_ptr.vmem [resolvable:$true] %s160
      %163 = dma.vmem_to_hbm [thread:$0]  %s161, 128, %s2, [#allocation6]
    $region13: #{tpu_custom_call.1} parent=1 // pred_fallthru
      _
    // Predicated region
    $region14: #{tpu_custom_call.1} parent=1 // pred_check
      _
    $region15: #{tpu_custom_call.1} parent=1 // pred_check_branch
      %165 = sbr.rel (0) target = $region17
    $region16: #{tpu_custom_call.1} parent=1 // pred_region
      %166 = dma.done [#allocation6], 128
    $region17: #{tpu_custom_call.1} parent=1 // pred_fallthru
      _
    %167 = vsyncpa [#allocation5], 1
    %168 = vsyncpa [#allocation6], 1

</llo_original>
